<compile_context>
chip_gen: v7x
topology: tpu7x:2x2x1
jax: 0.10.0
libtpu: 0.0.40
codegen_flags: <defaults>
</compile_context>

<pallas_src>
import functools
import math

import jax
import jax.numpy as jnp
from jax.experimental import pallas as pl
from jax.experimental.pallas import tpu as pltpu


# ----------------------------------------------------------------------------- kernels
def _glu_pair_kernel(a_ref, g_ref, o_ref):
    # a_ref / g_ref / o_ref share one block shape (pure elementwise).
    a = a_ref[...].astype(jnp.float32)
    g = g_ref[...].astype(jnp.float32)
    o_ref[...] = (a * jax.nn.sigmoid(g)).astype(o_ref.dtype)


def _glu_slice2d_kernel(x_ref, o_ref, *, H):
    # x_ref: (TR, 2H) full split axis on lanes; static slice inside the kernel.
    a = x_ref[:, :H].astype(jnp.float32)
    g = x_ref[:, H:].astype(jnp.float32)
    o_ref[...] = (a * jax.nn.sigmoid(g)).astype(o_ref.dtype)


def _glu_slice3d_kernel(x_ref, o_ref, *, H):
    # x_ref: (TB, 2H, TQ) full split axis on sublanes.
    a = x_ref[:, :H, :].astype(jnp.float32)
    g = x_ref[:, H:, :].astype(jnp.float32)
    o_ref[...] = (a * jax.nn.sigmoid(g)).astype(o_ref.dtype)


# ----------------------------------------------------------------------------- tiling helpers
def _budgets():
    """(per-output-block byte budget, scoped VMEM limit), generation aware."""
    try:
        vmem = int(pltpu.get_tpu_info().vmem_capacity_bytes)
    except Exception:
        vmem = 64 * 1024 * 1024  # unknown part: assume the smallest (v7x-like)
    if vmem >= 96 * 1024 * 1024:           # v5e / v6e: 128 MiB VMEM
        return 4 * 1024 * 1024, 64 * 1024 * 1024
    # v7x: 64 MiB VMEM -> ~2 MiB blocks; 6x block double-buffered stays << 64 MiB
    return 2 * 1024 * 1024, 32 * 1024 * 1024


def _sublane_unit(dtype):
    """Rows per fully-packed sublane tile: 8 (f32) / 16 (bf16) / 32 (int8/fp8)."""
    return max(8, 32 // jnp.dtype(dtype).itemsize)


def _largest_divisor_tile(total, unit, cap):
    """Largest multiple of `unit` dividing `total`, <= cap (requires total % unit == 0)."""
    t = min(cap, total)
    t -= t % unit
    t = max(t, unit)
    while t > unit and total % t != 0:
        t -= unit
    return t


def _ragged_tile(total, unit, cap):
    """Row tile for a cdiv grid (edge block may be partial): a multiple of
    `unit`, or the full extent when it already fits the budget cap."""
    cap = max(cap, unit)
    if total <= cap:
        return total                      # full extent is always a legal block dim
    return max(cap - cap % unit, unit)


def _split_rows_if_single(total, tile, unit, other_steps):
    """If the whole grid would be a single step, split the row axis in two so a
    v7x megacore can shard the work across both TensorCores."""
    if other_steps == 1 and tile >= total and total >= 2 * unit:
        half = pl.cdiv(total, 2)
        half = pl.cdiv(half, unit) * unit
        return min(half, tile)
    return tile


# ----------------------------------------------------------------------------- wrapper
def glu(x, dim=-1):
    """Pallas GLU: split x in half along `dim`, return first_half * sigmoid(second_half)."""
    ndim = x.ndim
    dim = dim % ndim
    two_h = x.shape[dim]
    assert two_h % 2 == 0, "GLU split axis must be even"
    H = two_h // 2

    lead = math.prod(x.shape[:dim]) if dim > 0 else 1
    trail = math.prod(x.shape[dim + 1:]) if dim < ndim - 1 else 1
    out_shape_full = x.shape[:dim] + (H,) + x.shape[dim + 1:]

    block_budget, vmem_limit = _budgets()
    itemsize = jnp.dtype(x.dtype).itemsize
    unit = _sublane_unit(x.dtype)

    if trail == 1:
        # ---- split axis is the last (lane) axis: canonical 2-D view (R, 2H) ----
        xv = x.reshape(lead, two_h)
        R = lead

        # Pair path only when the split axis is wide; otherwise one contiguous
        # block over the full 2H is cheaper (single DMA, one fewer input buffer).
        use_pair = (H % 128 == 0) and (two_h > 4096)

        if use_pair:
            # Gate tile = lane-block offset into the same HBM array.
            max_lanes = max(128, block_budget // (unit * itemsize))
            TD = _largest_divisor_tile(H, 128, min(H, max_lanes))
            off = H // TD
            nd = H // TD
            rows_cap = max(unit, block_budget // (TD * itemsize))
            TR = _ragged_tile(R, unit, min(rows_cap, 2048))
            TR = _split_rows_if_single(R, TR, unit, nd)
            grid = (pl.cdiv(R, TR), nd)
            out = pl.pallas_call(
                _glu_pair_kernel,
                out_shape=jax.ShapeDtypeStruct((R, H), x.dtype),
                grid_spec=pltpu.PrefetchScalarGridSpec(
                    num_scalar_prefetch=0,
                    grid=grid,
                    in_specs=[
                        pl.BlockSpec((TR, TD), lambda i, j: (i, j)),
                        pl.BlockSpec((TR, TD), lambda i, j: (i, j + off)),
                    ],
                    out_specs=pl.BlockSpec((TR, TD), lambda i, j: (i, j)),
                ),
                compiler_params=pltpu.CompilerParams(
                    dimension_semantics=("parallel", "parallel"),
                    vmem_limit_bytes=vmem_limit),
            )(xv, xv)
        else:
            # Single input block spans the full split axis; static in-kernel slice.
            kernel = functools.partial(_glu_slice2d_kernel, H=H)
            rows_cap = max(unit, block_budget // (H * itemsize))
            TR = _ragged_tile(R, unit, min(rows_cap, 8192))
            TR = _split_rows_if_single(R, TR, unit, 1)
            grid = (pl.cdiv(R, TR),)
            out = pl.pallas_call(
                kernel,
                out_shape=jax.ShapeDtypeStruct((R, H), x.dtype),
                grid_spec=pltpu.PrefetchScalarGridSpec(
                    num_scalar_prefetch=0,
                    grid=grid,
                    in_specs=[pl.BlockSpec((TR, two_h), lambda i: (i, 0))],
                    out_specs=pl.BlockSpec((TR, H), lambda i: (i, 0)),
                ),
                compiler_params=pltpu.CompilerParams(
                    dimension_semantics=("parallel",),
                    vmem_limit_bytes=vmem_limit),
            )(xv)
        return out.reshape(out_shape_full)

    # ---- split axis is an interior axis: canonical 3-D view (R, 2H, Q) ----
    xv = x.reshape(lead, two_h, trail)
    R, Q = lead, trail

    # Widen the contiguous (lane) dim first.
    lane_cap = 2048
    TQ = Q if Q <= lane_cap else lane_cap      # multiple of 128 when tiled; cdiv edge ok
    nq = pl.cdiv(Q, TQ)

    unit_h = unit if H % unit == 0 else 8

    if H % 8 == 0:
        # Pair path: gate block = sublane-block offset of the same HBM array.
        th_cap = max(unit_h, block_budget // max(1, TQ * itemsize))
        TH = _largest_divisor_tile(H, unit_h, min(H, th_cap))
        off = H // TH
        nh = H // TH
        rows_cap = max(1, block_budget // max(1, TH * TQ * itemsize))
        TB = min(R, rows_cap)
        TB = _split_rows_if_single(R, TB, 1, nh * nq)
        grid = (pl.cdiv(R, TB), nh, nq)
        out = pl.pallas_call(
            _glu_pair_kernel,
            out_shape=jax.ShapeDtypeStruct((R, H, Q), x.dtype),
            grid_spec=pltpu.PrefetchScalarGridSpec(
                num_scalar_prefetch=0,
                grid=grid,
                in_specs=[
                    pl.BlockSpec((TB, TH, TQ), lambda r, h, q: (r, h, q)),
                    pl.BlockSpec((TB, TH, TQ), lambda r, h, q: (r, h + off, q)),
                ],
                out_specs=pl.BlockSpec((TB, TH, TQ), lambda r, h, q: (r, h, q)),
            ),
            compiler_params=pltpu.CompilerParams(
                dimension_semantics=("parallel", "parallel", "parallel"),
                vmem_limit_bytes=vmem_limit),
        )(xv, xv)
    else:
        # Odd half-size: full split axis per block, static in-kernel slice.
        kernel = functools.partial(_glu_slice3d_kernel, H=H)
        rows_cap = max(1, block_budget // max(1, H * TQ * itemsize))
        TB = min(R, rows_cap)
        TB = _split_rows_if_single(R, TB, 1, nq)
        grid = (pl.cdiv(R, TB), nq)
        out = pl.pallas_call(
            kernel,
            out_shape=jax.ShapeDtypeStruct((R, H, Q), x.dtype),
            grid_spec=pltpu.PrefetchScalarGridSpec(
                num_scalar_prefetch=0,
                grid=grid,
                in_specs=[pl.BlockSpec((TB, two_h, TQ), lambda r, q: (r, 0, q))],
                out_specs=pl.BlockSpec((TB, H, TQ), lambda r, q: (r, 0, q)),
            ),
            compiler_params=pltpu.CompilerParams(
                dimension_semantics=("parallel", "parallel"),
                vmem_limit_bytes=vmem_limit),
        )(xv)
    return out.reshape(out_shape_full)


# ----------------------------------------------------------------------------- reference
def _reference(x, dim):
    a, g = jnp.split(x.astype(jnp.float32), 2, axis=dim)
    return (a * jax.nn.sigmoid(g)).astype(x.dtype)


if __name__ == "__main__":
    key = jax.random.PRNGKey(0)
    k1, k2, k3, k4 = jax.random.split(key, 4)

    # Case 1: feature-dim GLU (dim=-1), e.g. after a Linear producing 2*D feats.
    B, S, D = 2, 16, 128
    x1 = jax.random.normal(k1, (B, S, 2 * D), dtype=jnp.float32)
    out1 = jax.block_until_ready(glu(x1, dim=-1))
    ref1 = _reference(x1, dim=-1)
    assert out1.shape == ref1.shape, (out1.shape, ref1.shape)
    assert jnp.allclose(out1, ref1, atol=1e-6, rtol=1e-6), "mismatch (dim=-1, f32)"

    # Case 2: channel-dim GLU (dim=1), conv-style (B, 2C, N), bf16 I/O.
    B, C, N = 2, 16, 256
    x2 = jax.random.normal(k2, (B, 2 * C, N), dtype=jnp.bfloat16)
    out2 = jax.block_until_ready(glu(x2, dim=1))
    ref2 = _reference(x2, dim=1)
    assert out2.shape == ref2.shape, (out2.shape, ref2.shape)
    assert jnp.allclose(out2.astype(jnp.float32), ref2.astype(jnp.float32),
                        atol=2e-2, rtol=2e-2), "mismatch (dim=1, bf16)"

    # Case 3: small / lane-unaligned half (H=16 < 128) -> slice fallback path.
    x3 = jax.random.normal(key, (2, 8, 32), dtype=jnp.float32)
    out3 = jax.block_until_ready(glu(x3, dim=-1))
    ref3 = _reference(x3, dim=-1)
    assert out3.shape == ref3.shape, (out3.shape, ref3.shape)
    assert jnp.allclose(out3, ref3, atol=1e-6, rtol=1e-6), "mismatch (fallback)"

    # Case 4: ragged leading dim (R=30, not a multiple of 8) -> cdiv grid with
    # a partial edge block.
    x4 = jax.random.normal(k3, (3, 10, 256), dtype=jnp.float32)
    out4 = jax.block_until_ready(glu(x4, dim=-1))
    ref4 = _reference(x4, dim=-1)
    assert out4.shape == ref4.shape, (out4.shape, ref4.shape)
    assert jnp.allclose(out4, ref4, atol=1e-6, rtol=1e-6), "mismatch (ragged R)"

    # Case 5: wide split axis (2H = 8192 > 4096) -> two-input pair path with the
    # gate expressed as a lane-block offset of the same HBM array.
    x5 = jax.random.normal(k4, (4, 8192), dtype=jnp.float32)
    out5 = jax.block_until_ready(glu(x5, dim=-1))
    ref5 = _reference(x5, dim=-1)
    assert out5.shape == ref5.shape, (out5.shape, ref5.shape)
    assert jnp.allclose(out5, ref5, atol=1e-6, rtol=1e-6), "mismatch (pair path)"

    print("KERNEL_OK")
</pallas_src>

<mosaic_0001>
module attributes {stable_mosaic.version = 11 : i64} {
  func.func @_glu_slice2d_kernel(%arg0: i32, %arg1: memref<16x256xf32, #tpu.memory_space<vmem>>, %arg2: memref<16x128xf32, #tpu.memory_space<vmem>>) attributes {dimension_semantics = [#tpu.dimension_semantics<parallel>], iteration_bounds = array<i64: 2>, scalar_prefetch = 0 : i64, scratch_operands = 0 : i64, tpu.core_type = #tpu.core_type<tc>, window_params = [{transform_indices = @transform_0, window_bounds = array<i64: 16, 256>}, {transform_indices = @transform_1, window_bounds = array<i64: 16, 128>}]} {
    %c0 = arith.constant 0 : index
    %c0_0 = arith.constant 0 : index
    %0 = vector.load %arg1[%c0, %c0_0] : memref<16x256xf32, #tpu.memory_space<vmem>>, vector<16x128xf32>
    %c0_1 = arith.constant 0 : index
    %c128 = arith.constant 128 : index
    %1 = vector.load %arg1[%c0_1, %c128] : memref<16x256xf32, #tpu.memory_space<vmem>>, vector<16x128xf32>
    %2 = arith.negf %1 : vector<16x128xf32>
    %3 = math.exp %2 : vector<16x128xf32>
    %cst = arith.constant 1.000000e+00 : f32
    %4 = vector.broadcast %cst : f32 to vector<16x128xf32>
    %5 = arith.addf %4, %3 : vector<16x128xf32>
    %6 = arith.divf %4, %5 : vector<16x128xf32>
    %7 = arith.mulf %0, %6 : vector<16x128xf32>
    %c0_2 = arith.constant 0 : index
    %c0_3 = arith.constant 0 : index
    %8 = vector.load %arg2[%c0_2, %c0_3] : memref<16x128xf32, #tpu.memory_space<vmem>>, vector<16x128xf32>
    tpu.vector_store %arg2[%c0_2, %c0_3], %7 {strides = array<i32>} : memref<16x128xf32, #tpu.memory_space<vmem>>, vector<16x128xf32>,
    return
  }
  func.func @transform_0(%arg0: i32) -> (i32, i32) {
    %c0_i32 = arith.constant 0 : i32
    %c0_i32_0 = arith.constant 0 : i32
    return %arg0, %c0_i32 : i32, i32
  }
  func.func @transform_1(%arg0: i32) -> (i32, i32) {
    %c0_i32 = arith.constant 0 : i32
    %c0_i32_0 = arith.constant 0 : i32
    return %arg0, %c0_i32 : i32, i32
  }
}

</mosaic_0001>

<llo_original>
// kernel: tpu_custom_call.1
$region0: #{tpu_custom_call.1}
  #allocation0 [shape = 'u32[]', space=smem, size = 0x4, offset = 0x4, fixed_abs, tag = 'smem constant byte address 0x4 - core index']
  #allocation1 [shape = 'u32[144,128]{1,0:T(1,128)}', space=vmem, size = 0x12000, scoped, tag = 'internal scratch']
  %s0 = inlined_call_operand.hbm [shape: f32[32,256], index: 0, kind: input, shape index: {}]
  %s1 = inlined_call_operand.hbm [shape: f32[32,128], index: 1, kind: output, shape index: {}]
  %s2 = sld [smem:[#allocation0]]
  $region41: #{tpu_custom_call.1} parent=0
    _
  %s4 = ssub.s32 1, %s2
  %s5 = scalar_select 0, %s4, %s2
  $region1: #{tpu_custom_call.1} parent=0
    #allocation2 [shape = 'u8[32768]{0}', space=vmem, size = 0x8000, scoped, tag = 'input window, operand 0']
    #allocation3 [shape = 's32[2]{0}', space=sflag, size = 0x8, scoped, tag = 'scoped memory for tpu_custom_call.1']
    #allocation4 [shape = 's32[2]{0}', space=sflag, size = 0x8, scoped, tag = 'scoped memory for tpu_custom_call.1']
    #allocation5 [shape = 'u8[16384]{0}', space=vmem, size = 0x4000, scoped, tag = 'output window, operand 0']
    %6 = vsyncpa [#allocation3], 0
    %s7 = scalar_lea.sflag [#allocation3], 1
    %8 = vsyncpa %s7, 0
    %9 = vsyncpa [#allocation4], 0
    %s10 = scalar_lea.sflag [#allocation4], 1
    %11 = vsyncpa %s10, 0
    loop: start=0, step=1, limit=4
    $region2: #{tpu_custom_call.1} parent=1 // loop_pre_header
      _
    $region3: #{tpu_custom_call.1} parent=1 // loop_header
      %s13 = sphi 0, %s17
      %p14 = scmp.ge.s32.totalorder %s13, 4
      %s23 = sphi 0, %s25
      %s26 = sphi 0, %s23
      %s27 = sphi 0, %s26
      %s43 = sphi 0, %s27
      %s49 = sphi 0, %s51
      %s52 = sphi 0, %s49
      %s53 = sphi 0, %s52
      %s69 = sphi 0, %s53
    $region4: #{tpu_custom_call.1} parent=1 // loop_header_branch
      %16 = sbr.rel (%p14) target = $region8
    $region5: #{tpu_custom_call.1} parent=1 // loop_body
      %s18 = ssub.s32 %s13, 1
      %s19 = ssub.s32 %s13, 2
      %s20 = sadd.s32 %s13, 1
      %s21 = ssub.s32 %s13, %s20
      %p22 = scmp.eq.s32.totalorder %s21, 0
      %s24 = sadd.s32 %s23, 1
      %s25 = scalar_select %p22, %s23, %s24
      %p28 = pneg %p22
      %p29 = scmp.eq.s32.totalorder %s13, 1
      %p30 = por %p28, %p29
      %p31 = scmp.ne.s32.totalorder %s23, %s26
      %p32 = scmp.eq.s32.totalorder %s13, 0
      %p33 = por %p31, %p32
      %p34 = scmp.ne.s32.totalorder %s23, %s26
      %p35 = scmp.eq.s32.totalorder %s18, 1
      %p36 = por %p34, %p35
      %p37 = scmp.ne.s32.totalorder %s26, %s27
      %p38 = scmp.eq.s32.totalorder %s18, 0
      %p39 = por %p37, %p38
      %p40 = scmp.ne.s32.totalorder %s26, %s27
      %p41 = scmp.eq.s32.totalorder %s19, 1
      %p42 = por %p40, %p41
      %p44 = scmp.ne.s32.totalorder %s27, %s43
      %p45 = scmp.eq.s32.totalorder %s19, 0
      %p46 = por %p44, %p45
      %s47 = ssub.s32 %s13, %s20
      %p48 = scmp.eq.s32.totalorder %s47, 0
      %s50 = sadd.s32 %s49, 1
      %s51 = scalar_select %p48, %s49, %s50
      %p54 = pneg %p48
      %p55 = scmp.eq.s32.totalorder %s13, 1
      %p56 = por %p54, %p55
      %p57 = scmp.ne.s32.totalorder %s49, %s52
      %p58 = scmp.eq.s32.totalorder %s13, 0
      %p59 = por %p57, %p58
      %p60 = scmp.ne.s32.totalorder %s49, %s52
      %p61 = scmp.eq.s32.totalorder %s18, 1
      %p62 = por %p60, %p61
      %p63 = scmp.ne.s32.totalorder %s52, %s53
      %p64 = scmp.eq.s32.totalorder %s18, 0
      %p65 = por %p63, %p64
      %p66 = scmp.ne.s32.totalorder %s52, %s53
      %p67 = scmp.eq.s32.totalorder %s19, 1
      %p68 = por %p66, %p67
      %p70 = scmp.ne.s32.totalorder %s53, %s69
      %p71 = scmp.eq.s32.totalorder %s19, 0
      %p72 = por %p70, %p71
      %p73 = scmp.le.s32.totalorder 1, %s13
      %p74 = scmp.lt.s32.totalorder %s13, 3
      %p75 = pnand %p73, %p74
      %p76 = pneg %p75
      // Predicated region
      $region9: #{tpu_custom_call.1} parent=5 // pred_check
        _
      $region10: #{tpu_custom_call.1} parent=5 // pred_check_branch
        %78 = sbr.rel (%p75) target = $region12
      $region11: #{tpu_custom_call.1} parent=5 // pred_region
        %s79 = ssub.s32 %s13, 1
      $region12: #{tpu_custom_call.1} parent=5 // pred_fallthru
        _
      %p80 = scmp.lt.s32.totalorder %s13, 2
      // Predicated region
      $region13: #{tpu_custom_call.1} parent=5 // pred_check
        %p81 = pneg %p80
      $region14: #{tpu_custom_call.1} parent=5 // pred_check_branch
        %83 = sbr.rel (%p81) target = $region16
      $region15: #{tpu_custom_call.1} parent=5 // pred_region
        // Predicated region
        $region17: #{tpu_custom_call.1} parent=15 // pred_check
          %p84 = pneg %p33
        $region18: #{tpu_custom_call.1} parent=15 // pred_check_branch
          %86 = sbr.rel (%p84) target = $region20
        $region19: #{tpu_custom_call.1} parent=15 // pred_region
          %s87 = sand.u32 %s23, 1
          %s88 = scalar_lea.sflag [#allocation3], %s87
          %s89 = sand.u32 %s23, 1
          %s90 = smul.addr %s89, 32
          %s91 = scalar_lea.vmem [#allocation2], %s90
          %s92 = smul.u32 2, %s13
          %s94 = ssub.s32 512, 512
          %95 = vsyncadd %s88, %s94
          %s96 = smul.addr %s92, 2
          %s97 = smul.addr %s96, 128
          %s98 = scalar_lea.hbm %s0, %s97
          %s99 = sshll.u32 %s91, 4
          %s100 = int_to_ptr.vmem [resolvable:$true] %s99
          %105 = dma.hbm_to_vmem [thread:$0]  %s98, 512, %s100, %s88, 256, 256, 16
        $region20: #{tpu_custom_call.1} parent=15 // pred_fallthru
          _
      $region16: #{tpu_custom_call.1} parent=5 // pred_fallthru
        _
      %p106 = scmp.le.s32.totalorder 1, %s13
      %p107 = scmp.lt.s32.totalorder %s13, 3
      %p108 = pnand %p106, %p107
      %p109 = pneg %p108
      // Predicated region
      $region21: #{tpu_custom_call.1} parent=5 // pred_check
        _
      $region22: #{tpu_custom_call.1} parent=5 // pred_check_branch
        %111 = sbr.rel (%p108) target = $region24
      $region23: #{tpu_custom_call.1} parent=5 // pred_region
        %s112 = ssub.s32 %s13, 1
        %s113 = sand.u32 %s26, 1
        %s114 = scalar_lea.sflag [#allocation3], %s113
        %s115 = sand.u32 %s26, 1
        %s116 = smul.addr %s115, 32
        %s117 = scalar_lea.vmem [#allocation2], %s116
        // Predicated region
        $region25: #{tpu_custom_call.1} parent=23 // pred_check
          %p118 = pneg %p39
        $region26: #{tpu_custom_call.1} parent=23 // pred_check_branch
          %120 = sbr.rel (%p118) target = $region28
        $region27: #{tpu_custom_call.1} parent=23 // pred_region
          %121 = dma.done %s114, 512
        $region28: #{tpu_custom_call.1} parent=23 // pred_fallthru
          _
        %s122 = sand.u32 %s26, 1
        %s123 = scalar_lea.sflag [#allocation3], %s122
        %s124 = sand.u32 %s26, 1
        %s125 = smul.addr %s124, 32
        %s126 = scalar_lea.vmem [#allocation2], %s125
        %p127 = pneg %p39
        %p128 = pneg %p36
        %p129 = pneg %p65
        %p130 = pneg %p62
        %s131 = sand.u32 %s52, 1
        %s132 = scalar_lea.sflag [#allocation4], %s131
        %s133 = sand.u32 %s52, 1
        %s134 = smul.addr %s133, 16
        %s135 = scalar_lea.vmem [#allocation5], %s134
        %s136 = smul.u32 2, %s18
        %s137 = smul.u32 2, %s18
        %v138 = vld [vmem:[%s117] sm:$0xff]
        %v139 = vld [vmem:[%s117 + $0x10] sm:$0xff]
        %v140 = vld [vmem:[%s117 + $0x8] sm:$0xff]
        %v141 = vld [vmem:[%s117 + $0x18] sm:$0xff]
        %v142 = vxor.u32 %v140, 2147483648
        %v143 = vxor.u32 %v141, 2147483648
        %v144 = vmul.f32 %v142, 1.442695
        %v145 = vpow.pop %v144
        %v146 = vmul.f32 %v143, 1.442695
        %v147 = vpow.pop %v146
        %v148 = vadd.f32 %v145, 1.0
        %v149 = vadd.f32 %v147, 1.0
        %v150 = vrcp.pop %v148
        %v151 = vmul.f32 1.0, %v150
        %v152 = vrcp.pop %v149
        %v153 = vmul.f32 1.0, %v152
        %v154 = vmul.f32 %v138, %v151
        %v155 = vmul.f32 %v139, %v153
        %156 = vst [vmem:[%s135] sm:$0xff] %v154
        %157 = vst [vmem:[%s135 + $0x8] sm:$0xff] %v155
        %s158 = sand.u32 %s52, 1
        %s159 = scalar_lea.sflag [#allocation4], %s158
        %s160 = sand.u32 %s52, 1
        %s161 = smul.addr %s160, 16
        %s162 = scalar_lea.vmem [#allocation5], %s161
        // Predicated region
        $region29: #{tpu_custom_call.1} parent=23 // pred_check
          %p163 = pneg %p62
        $region30: #{tpu_custom_call.1} parent=23 // pred_check_branch
          %165 = sbr.rel (%p163) target = $region32
        $region31: #{tpu_custom_call.1} parent=23 // pred_region
          %s166 = smul.u32 2, %s18
          %s168 = ssub.s32 256, 256
          %169 = vsyncadd %s159, %s168
          %s170 = smul.addr %s166, 128
          %s171 = scalar_lea.hbm %s1, %s170
          %s172 = sshll.u32 %s162, 4
          %s173 = int_to_ptr.vmem [resolvable:$true] %s172
          %178 = dma.vmem_to_hbm [thread:$0]  %s173, 256, %s171, %s159, 128, 128, 8
        $region32: #{tpu_custom_call.1} parent=23 // pred_fallthru
          _
      $region24: #{tpu_custom_call.1} parent=5 // pred_fallthru
        _
      %p179 = scmp.le.s32.totalorder 2, %s13
      // Predicated region
      $region33: #{tpu_custom_call.1} parent=5 // pred_check
        %p180 = pneg %p179
      $region34: #{tpu_custom_call.1} parent=5 // pred_check_branch
        %182 = sbr.rel (%p180) target = $region36
      $region35: #{tpu_custom_call.1} parent=5 // pred_region
        %s183 = ssub.s32 %s13, 2
        // Predicated region
        $region37: #{tpu_custom_call.1} parent=35 // pred_check
          %p184 = pneg %p68
        $region38: #{tpu_custom_call.1} parent=35 // pred_check_branch
          %186 = sbr.rel (%p184) target = $region40
        $region39: #{tpu_custom_call.1} parent=35 // pred_region
          %s187 = sand.u32 %s53, 1
          %s188 = scalar_lea.sflag [#allocation4], %s187
          %s189 = sand.u32 %s53, 1
          %s190 = smul.addr %s189, 16
          %s191 = scalar_lea.vmem [#allocation5], %s190
          %192 = dma.done %s188, 256
        $region40: #{tpu_custom_call.1} parent=35 // pred_fallthru
          _
      $region36: #{tpu_custom_call.1} parent=5 // pred_fallthru
        _
    $region6: #{tpu_custom_call.1} parent=1 // loop_footer
      %s17 = sadd.s32 1, %s13
    $region7: #{tpu_custom_call.1} parent=1 // loop_footer_branch
      %12 = sbr.rel target = $region3
    $region8: #{tpu_custom_call.1} parent=1 // loop_exit
      _
    %193 = vsyncpa [#allocation3], 1
    %s194 = scalar_lea.sflag [#allocation3], 1
    %195 = vsyncpa %s194, 1
    %196 = vsyncpa [#allocation4], 1
    %s197 = scalar_lea.sflag [#allocation4], 1
    %198 = vsyncpa %s197, 1

</llo_original>
